<compile_context>
chip_gen: v7x
topology: tpu7x:2x2x1
jax: 0.10.0
libtpu: 0.0.40
codegen_flags: <defaults>
</compile_context>

<pallas_src>
import functools

import jax
import jax.numpy as jnp
from jax.experimental import pallas as pl
from jax.experimental.pallas import tpu as pltpu

_MIB = 1024 * 1024


def _identity_kernel(x_ref, o_ref):
    # Pure copy: the whole "forward" of Identity.
    o_ref[...] = x_ref[...]


def _sublane_multiple(dtype) -> int:
    itemsize = jnp.dtype(dtype).itemsize
    if itemsize >= 4:
        return 8
    if itemsize == 2:
        return 16
    return 32


@functools.lru_cache(maxsize=1)
def _tpu_hw():
    """(physical_vmem_bytes, tensorcores_per_chip) with conservative fallbacks."""
    vmem = None
    cores = None
    try:
        info = pltpu.get_tpu_info()
        v = getattr(info, "vmem_capacity_bytes", None)
        if isinstance(v, int) and v > 0:
            vmem = v
        for name in ("num_tensorcores", "tensorcores_per_chip", "num_cores",
                     "cores_per_chip"):
            c = getattr(info, name, None)
            if isinstance(c, int) and c > 0:
                cores = c
                break
    except Exception:
        pass
    if vmem is None:
        vmem = 64 * _MIB   # smallest physical VMEM per TC (v7x) -> always safe
    if cores is None:
        cores = 1          # v5e / v6e have one TensorCore per chip
    return vmem, cores


def _budgets():
    """Per-generation block size, single-block limit, and explicit VMEM limit."""
    vmem, cores = _tpu_hw()
    # In-flight budget (input + output tiles, double-buffered = 4x block bytes).
    inflight_budget = min(vmem // 2, 32 * _MIB)
    block_bytes = max(2 * _MIB, min(8 * _MIB, inflight_budget // 4))
    # Single-block path is single-buffered (Buffered(1)) -> 2x block in flight.
    single_block_limit = inflight_budget // 2
    vmem_limit = min((vmem * 5) // 8, 48 * _MIB)
    vmem_limit = max(vmem_limit, 4 * block_bytes + 4 * _MIB)
    vmem_limit = min(vmem_limit, vmem)
    return block_bytes, single_block_limit, vmem_limit, cores


def _identity_pallas_copy(x: jax.Array, *, donate: bool = False) -> jax.Array:
    """Explicit Pallas copy kernel (lane-dense layout, per-generation blocks)."""
    orig_shape = x.shape
    dtype = x.dtype
    itemsize = jnp.dtype(dtype).itemsize
    total = x.size
    if total == 0:
        return x

    sub = _sublane_multiple(dtype)
    block_bytes, single_block_limit, vmem_limit, cores = _budgets()

    # Lane-dense factorization: prefer the widest lane width whose row count is
    # a sublane multiple (tileable); else remember the widest factorization.
    tileable = None
    widest = None
    for lw in (4096, 2048, 1024, 512, 256, 128):
        if total % lw:
            continue
        rows_c = total // lw
        if widest is None:
            widest = (rows_c, lw)
        if rows_c % sub == 0:
            tileable = (rows_c, lw)
            break

    if widest is None:
        # No lane-dense factorization at all; zero-copy is bit-exact & fastest.
        # TODO(synk): pad-to-128 copy path if a real launch is required here.
        return x

    if tileable is not None:
        rows, lane_width = tileable
        # Byte-targeted row tile, rounded to the dtype-aware sublane multiple.
        tr = max(sub, (block_bytes // (lane_width * itemsize)) // sub * sub)
        tr = min(tr, rows)
        tr = max(sub, (tr // sub) * sub)
        while tr > sub and rows % tr != 0:
            tr -= sub
        if rows % tr != 0:
            tr = sub  # sub divides rows, so this always divides
        # Only split a single-block copy across grid steps when the chip has
        # >=2 TensorCores (v7x); on v5e/v6e the split is pure overhead.
        if cores >= 2 and tr == rows and rows >= cores * sub:
            split = (rows // cores) // sub * sub
            while split > sub and rows % split != 0:
                split -= sub
            if split >= sub and rows % split == 0:
                tr = split
    else:
        rows, lane_width = widest
        if total * itemsize > single_block_limit:
            # Not sublane-tileable and too big for one block: zero-copy fallback
            # (semantics identical).
            return x
        tr = rows  # single block equal to full array dims is always legal

    grid_n = rows // tr
    x2d = x.reshape(rows, lane_width)

    def _build(single_buffered: bool):
        spec_kwargs = {}
        if single_buffered:
            spec_kwargs["pipeline_mode"] = pl.Buffered(1)
        in_spec = pl.BlockSpec((tr, lane_width), lambda i: (i, 0), **spec_kwargs)
        out_spec = pl.BlockSpec((tr, lane_width), lambda i: (i, 0), **spec_kwargs)
        call_kwargs = {}
        if donate:
            # Only a win when the caller actually donates x; otherwise XLA
            # inserts a defensive copy (still correct).
            call_kwargs["input_output_aliases"] = {0: 0}
        return pl.pallas_call(
            _identity_kernel,
            out_shape=jax.ShapeDtypeStruct((rows, lane_width), dtype),
            grid_spec=pltpu.PrefetchScalarGridSpec(
                num_scalar_prefetch=0,
                grid=(grid_n,),
                in_specs=[in_spec],
                out_specs=out_spec,
            ),
            compiler_params=pltpu.CompilerParams(
                dimension_semantics=("parallel",),
                vmem_limit_bytes=vmem_limit,
            ),
            cost_estimate=pl.CostEstimate(
                flops=0,
                transcendentals=0,
                bytes_accessed=2 * total * itemsize,
            ),
            **call_kwargs,
        )

    if grid_n == 1:
        # Single-step grid: request single buffering (halves VMEM in flight).
        try:
            out2d = _build(True)(x2d)
        except Exception:
            out2d = _build(False)(x2d)
    else:
        out2d = _build(False)(x2d)

    return out2d.reshape(orig_shape)


def identity(x: jax.Array, *, force_kernel: bool = False,
             donate: bool = False) -> jax.Array:
    """Pallas implementation of Identity.forward (returns x unchanged).

    Default path is the zero-cost short circuit (return x).  Set
    force_kernel=True to run the explicit Pallas copy kernel; donate=True
    additionally aliases the output onto the (donated) input buffer.
    """
    if not force_kernel:
        return x
    return _identity_pallas_copy(x, donate=donate)


if __name__ == "__main__":
    key = jax.random.PRNGKey(0)

    # NCHW input, small shapes: batch=2, channels=4, spatial=16x16.
    x = jax.random.normal(key, (2, 4, 16, 16), dtype=jnp.float32)

    # Default path: zero-copy short circuit.
    y_fast = identity(x)
    jax.block_until_ready(y_fast)
    assert y_fast.shape == x.shape and y_fast.dtype == x.dtype
    assert bool(jnp.array_equal(y_fast, x)), "Identity (short-circuit) mismatch"

    # Explicit Pallas kernel path (single lane-dense block, single-buffered).
    y_kernel = identity(x, force_kernel=True)
    jax.block_until_ready(y_kernel)
    assert y_kernel.shape == x.shape and y_kernel.dtype == x.dtype
    assert bool(jnp.array_equal(y_kernel, x)), "Identity (Pallas kernel) mismatch"

    # Larger input (16 MiB) to exercise the multi-block double-buffered path.
    key2 = jax.random.PRNGKey(1)
    x2 = jax.random.normal(key2, (8, 8, 256, 256), dtype=jnp.float32)
    y2 = identity(x2, force_kernel=True)
    jax.block_until_ready(y2)
    assert y2.shape == x2.shape and y2.dtype == x2.dtype
    assert bool(jnp.array_equal(y2, x2)), "Identity (tiled Pallas kernel) mismatch"

    # bf16 input to exercise the 16-row sublane rounding path.
    x3 = jax.random.normal(jax.random.PRNGKey(2), (8, 16, 32, 32)).astype(jnp.bfloat16)
    y3 = identity(x3, force_kernel=True)
    jax.block_until_ready(y3)
    assert y3.shape == x3.shape and y3.dtype == x3.dtype
    assert bool(jnp.array_equal(y3, x3)), "Identity (bf16 Pallas kernel) mismatch"

    print("KERNEL_OK")
</pallas_src>

<mosaic_0001>
module attributes {stable_mosaic.version = 11 : i64} {
  func.func @_identity_kernel(%arg0: i32, %arg1: memref<8x256xf32, #tpu.memory_space<vmem>>, %arg2: memref<8x256xf32, #tpu.memory_space<vmem>>) attributes {dimension_semantics = [#tpu.dimension_semantics<parallel>], iteration_bounds = array<i64: 1>, scalar_prefetch = 0 : i64, scratch_operands = 0 : i64, tpu.core_type = #tpu.core_type<tc>, window_params = [{pipeline_mode = #tpu.pipeline_mode<synchronous>, transform_indices = @transform_0, window_bounds = array<i64: 8, 256>}, {pipeline_mode = #tpu.pipeline_mode<synchronous>, transform_indices = @transform_1, window_bounds = array<i64: 8, 256>}]} {
    %c0 = arith.constant 0 : index
    %c0_0 = arith.constant 0 : index
    %0 = vector.load %arg1[%c0, %c0_0] : memref<8x256xf32, #tpu.memory_space<vmem>>, vector<8x256xf32>
    %c0_1 = arith.constant 0 : index
    %c0_2 = arith.constant 0 : index
    %1 = vector.load %arg2[%c0_1, %c0_2] : memref<8x256xf32, #tpu.memory_space<vmem>>, vector<8x256xf32>
    tpu.vector_store %arg2[%c0_1, %c0_2], %0 {strides = array<i32>} : memref<8x256xf32, #tpu.memory_space<vmem>>, vector<8x256xf32>,
    return
  }
  func.func @transform_0(%arg0: i32) -> (i32, i32) {
    %c0_i32 = arith.constant 0 : i32
    %c0_i32_0 = arith.constant 0 : i32
    return %arg0, %c0_i32 : i32, i32
  }
  func.func @transform_1(%arg0: i32) -> (i32, i32) {
    %c0_i32 = arith.constant 0 : i32
    %c0_i32_0 = arith.constant 0 : i32
    return %arg0, %c0_i32 : i32, i32
  }
}

module attributes {stable_mosaic.version = 11 : i64} {
  func.func @_identity_kernel(%arg0: i32, %arg1: memref<8x256xf32, #tpu.memory_space<vmem>>, %arg2: memref<8x256xf32, #tpu.memory_space<vmem>>) attributes {dimension_semantics = [#tpu.dimension_semantics<parallel>], iteration_bounds = array<i64: 1>, scalar_prefetch = 0 : i64, scratch_operands = 0 : i64, tpu.core_type = #tpu.core_type<tc>, window_params = [{transform_indices = @transform_0, window_bounds = array<i64: 8, 256>}, {transform_indices = @transform_1, window_bounds = array<i64: 8, 256>}]} {
    %c0 = arith.constant 0 : index
    %c0_0 = arith.constant 0 : index
    %0 = vector.load %arg1[%c0, %c0_0] : memref<8x256xf32, #tpu.memory_space<vmem>>, vector<8x256xf32>
    %c0_1 = arith.constant 0 : index
    %c0_2 = arith.constant 0 : index
    %1 = vector.load %arg2[%c0_1, %c0_2] : memref<8x256xf32, #tpu.memory_space<vmem>>, vector<8x256xf32>
    tpu.vector_store %arg2[%c0_1, %c0_2], %0 {strides = array<i32>} : memref<8x256xf32, #tpu.memory_space<vmem>>, vector<8x256xf32>,
    return
  }
  func.func @transform_0(%arg0: i32) -> (i32, i32) {
    %c0_i32 = arith.constant 0 : i32
    %c0_i32_0 = arith.constant 0 : i32
    return %arg0, %c0_i32 : i32, i32
  }
  func.func @transform_1(%arg0: i32) -> (i32, i32) {
    %c0_i32 = arith.constant 0 : i32
    %c0_i32_0 = arith.constant 0 : i32
    return %arg0, %c0_i32 : i32, i32
  }
}

</mosaic_0001>

<llo_original>
// kernel: tpu_custom_call.1
$region0: #{tpu_custom_call.1}
  #allocation0 [shape = 'u32[]', space=smem, size = 0x4, offset = 0x4, fixed_abs, tag = 'smem constant byte address 0x4 - core index']
  #allocation1 [shape = 'u32[144,128]{1,0:T(1,128)}', space=vmem, size = 0x12000, scoped, tag = 'internal scratch']
  %s0 = inlined_call_operand.hbm [shape: f32[8,256], index: 0, kind: input, shape index: {}]
  %s1 = inlined_call_operand.hbm [shape: f32[8,256], index: 1, kind: output, shape index: {}]
  %s2 = sld [smem:[#allocation0]]
  $region18: #{tpu_custom_call.1} parent=0
    _
  %s4 = ssub.s32 1, %s2
  %s5 = scalar_select 0, %s4, %s2
  $region1: #{tpu_custom_call.1} parent=0
    #allocation2 [shape = 'u8[8192]{0}', space=vmem, size = 0x2000, scoped, tag = 'input window, operand 0, single buffered']
    #allocation3 [shape = 's32[1]{0}', space=sflag, size = 0x4, scoped, tag = 'scoped memory for tpu_custom_call.1']
    #allocation4 [shape = 's32[1]{0}', space=sflag, size = 0x4, scoped, tag = 'scoped memory for tpu_custom_call.1']
    #allocation5 [shape = 'u8[8192]{0}', space=vmem, size = 0x2000, scoped, tag = 'output window, operand 0, single buffered']
    %6 = vsyncpa [#allocation3], 0
    %7 = vsyncpa [#allocation4], 0
    // Predicated region
    $region2: #{tpu_custom_call.1} parent=1 // pred_check
      _
    $region3: #{tpu_custom_call.1} parent=1 // pred_check_branch
      %9 = sbr.rel (0) target = $region5
    $region4: #{tpu_custom_call.1} parent=1 // pred_region
      %s11 = ssub.s32 256, 256
      %12 = vsyncadd [#allocation3], %s11
      %s14 = sshll.u32 [#allocation2], 4
      %s15 = int_to_ptr.vmem [resolvable:$true] %s14
      %17 = dma.hbm_to_vmem [thread:$0]  %s0, 256, %s15, [#allocation3]
    $region5: #{tpu_custom_call.1} parent=1 // pred_fallthru
      _
    // Predicated region
    $region6: #{tpu_custom_call.1} parent=1 // pred_check
      _
    $region7: #{tpu_custom_call.1} parent=1 // pred_check_branch
      %19 = sbr.rel (0) target = $region9
    $region8: #{tpu_custom_call.1} parent=1 // pred_region
      %20 = dma.done [#allocation3], 256
    $region9: #{tpu_custom_call.1} parent=1 // pred_fallthru
      _
    %v21 = vld [vmem:[#allocation2] sm:$0xff]
    %v22 = vld [vmem:[#allocation2 + $0x8] sm:$0xff]
    %23 = vst [vmem:[#allocation5] sm:$0xff] %v21
    %24 = vst [vmem:[#allocation5 + $0x8] sm:$0xff] %v22
    // Predicated region
    $region10: #{tpu_custom_call.1} parent=1 // pred_check
      _
    $region11: #{tpu_custom_call.1} parent=1 // pred_check_branch
      %26 = sbr.rel (0) target = $region13
    $region12: #{tpu_custom_call.1} parent=1 // pred_region
      %s28 = ssub.s32 256, 256
      %29 = vsyncadd [#allocation4], %s28
      %s31 = sshll.u32 [#allocation5], 4
      %s32 = int_to_ptr.vmem [resolvable:$true] %s31
      %34 = dma.vmem_to_hbm [thread:$0]  %s32, 256, %s1, [#allocation4]
    $region13: #{tpu_custom_call.1} parent=1 // pred_fallthru
      _
    // Predicated region
    $region14: #{tpu_custom_call.1} parent=1 // pred_check
      _
    $region15: #{tpu_custom_call.1} parent=1 // pred_check_branch
      %36 = sbr.rel (0) target = $region17
    $region16: #{tpu_custom_call.1} parent=1 // pred_region
      %37 = dma.done [#allocation4], 256
    $region17: #{tpu_custom_call.1} parent=1 // pred_fallthru
      _
    %38 = vsyncpa [#allocation3], 1
    %39 = vsyncpa [#allocation4], 1

// kernel: tpu_custom_call.1
$region0: #{tpu_custom_call.1}
  #allocation0 [shape = 'u32[]', space=smem, size = 0x4, offset = 0x4, fixed_abs, tag = 'smem constant byte address 0x4 - core index']
  #allocation1 [shape = 'u32[144,128]{1,0:T(1,128)}', space=vmem, size = 0x12000, scoped, tag = 'internal scratch']
  %s0 = inlined_call_operand.hbm [shape: f32[8,256], index: 0, kind: input, shape index: {}]
  %s1 = inlined_call_operand.hbm [shape: f32[8,256], index: 1, kind: output, shape index: {}]
  %s2 = sld [smem:[#allocation0]]
  $region18: #{tpu_custom_call.1} parent=0
    _
  %s4 = ssub.s32 1, %s2
  %s5 = scalar_select 0, %s4, %s2
  $region1: #{tpu_custom_call.1} parent=0
    #allocation2 [shape = 'u8[8192]{0}', space=vmem, size = 0x2000, scoped, tag = 'input window, operand 0, single buffered']
    #allocation3 [shape = 's32[1]{0}', space=sflag, size = 0x4, scoped, tag = 'scoped memory for tpu_custom_call.1']
    #allocation4 [shape = 's32[1]{0}', space=sflag, size = 0x4, scoped, tag = 'scoped memory for tpu_custom_call.1']
    #allocation5 [shape = 'u8[8192]{0}', space=vmem, size = 0x2000, scoped, tag = 'output window, operand 0, single buffered']
    %6 = vsyncpa [#allocation3], 0
    %7 = vsyncpa [#allocation4], 0
    // Predicated region
    $region2: #{tpu_custom_call.1} parent=1 // pred_check
      _
    $region3: #{tpu_custom_call.1} parent=1 // pred_check_branch
      %9 = sbr.rel (0) target = $region5
    $region4: #{tpu_custom_call.1} parent=1 // pred_region
      %s11 = ssub.s32 256, 256
      %12 = vsyncadd [#allocation3], %s11
      %s14 = sshll.u32 [#allocation2], 4
      %s15 = int_to_ptr.vmem [resolvable:$true] %s14
      %17 = dma.hbm_to_vmem [thread:$0]  %s0, 256, %s15, [#allocation3]
    $region5: #{tpu_custom_call.1} parent=1 // pred_fallthru
      _
    // Predicated region
    $region6: #{tpu_custom_call.1} parent=1 // pred_check
      _
    $region7: #{tpu_custom_call.1} parent=1 // pred_check_branch
      %19 = sbr.rel (0) target = $region9
    $region8: #{tpu_custom_call.1} parent=1 // pred_region
      %20 = dma.done [#allocation3], 256
    $region9: #{tpu_custom_call.1} parent=1 // pred_fallthru
      _
    %v21 = vld [vmem:[#allocation2] sm:$0xff]
    %v22 = vld [vmem:[#allocation2 + $0x8] sm:$0xff]
    %23 = vst [vmem:[#allocation5] sm:$0xff] %v21
    %24 = vst [vmem:[#allocation5 + $0x8] sm:$0xff] %v22
    // Predicated region
    $region10: #{tpu_custom_call.1} parent=1 // pred_check
      _
    $region11: #{tpu_custom_call.1} parent=1 // pred_check_branch
      %26 = sbr.rel (0) target = $region13
    $region12: #{tpu_custom_call.1} parent=1 // pred_region
      %s28 = ssub.s32 256, 256
      %29 = vsyncadd [#allocation4], %s28
      %s31 = sshll.u32 [#allocation5], 4
      %s32 = int_to_ptr.vmem [resolvable:$true] %s31
      %34 = dma.vmem_to_hbm [thread:$0]  %s32, 256, %s1, [#allocation4]
    $region13: #{tpu_custom_call.1} parent=1 // pred_fallthru
      _
    // Predicated region
    $region14: #{tpu_custom_call.1} parent=1 // pred_check
      _
    $region15: #{tpu_custom_call.1} parent=1 // pred_check_branch
      %36 = sbr.rel (0) target = $region17
    $region16: #{tpu_custom_call.1} parent=1 // pred_region
      %37 = dma.done [#allocation4], 256
    $region17: #{tpu_custom_call.1} parent=1 // pred_fallthru
      _
    %38 = vsyncpa [#allocation3], 1
    %39 = vsyncpa [#allocation4], 1

</llo_original>
